<compile_context>
chip_gen: v5e
topology: v5e:2x2
jax: 0.10.0
libtpu: 0.0.40
codegen_flags: <defaults>
</compile_context>

<pallas_src>
import jax
import jax.numpy as jnp
from jax.experimental import pallas as pl
from jax.experimental.pallas import tpu as pltpu

BN_EPS = 1e-5
LEAKY_SLOPE = 0.01  # PyTorch nn.LeakyReLU default


def _stats_kernel(x_ref, w_ref, stats_ref):
    # x_ref: (tm, K) bf16 patches; w_ref: (K, C_pad) bf16; stats_ref: (1, 2, C_pad) f32
    y = jnp.dot(x_ref[...], w_ref[...], preferred_element_type=jnp.float32)
    s1 = jnp.sum(y, axis=0, keepdims=True)        # (1, C_pad)
    s2 = jnp.sum(y * y, axis=0, keepdims=True)    # (1, C_pad)
    stats_ref[0] = jnp.concatenate([s1, s2], axis=0)


def _conv_stats_kernel(x_ref, w_ref, y_ref, stats_ref):
    # Materialize path: additionally stores the conv output tile as bf16.
    y = jnp.dot(x_ref[...], w_ref[...], preferred_element_type=jnp.float32)
    y_ref[...] = y.astype(y_ref.dtype)
    s1 = jnp.sum(y, axis=0, keepdims=True)
    s2 = jnp.sum(y * y, axis=0, keepdims=True)
    stats_ref[0] = jnp.concatenate([s1, s2], axis=0)


def _matmul_bn_act_kernel(x_ref, w_ref, scale_ref, shift_ref, o_ref):
    # Recompute path phase 2: conv matmul redone from patches, then BN + LeakyReLU.
    y = jnp.dot(x_ref[...], w_ref[...], preferred_element_type=jnp.float32)
    z = y * scale_ref[...] + shift_ref[...]
    o_ref[...] = jnp.maximum(z, LEAKY_SLOPE * z)  # LeakyReLU(z) == max(z, slope*z)


def _bn_act_kernel(y_ref, scale_ref, shift_ref, o_ref):
    # Materialize path phase 2: bf16 y -> f32 normalize + LeakyReLU.
    z = y_ref[...].astype(jnp.float32) * scale_ref[...] + shift_ref[...]
    o_ref[...] = jnp.maximum(z, LEAKY_SLOPE * z)


def _round_up(v, mult):
    return ((v + mult - 1) // mult) * mult


def down_conv(x_nchw, weight, bias, gamma, beta, *, tm=1024, channels_last=False):
    """Forward pass of DownConv (training-mode BatchNorm, batch statistics).

    x_nchw: (N, C_in, H, W) f32; weight: (C_out, C_in, 3, 3); bias/gamma/beta: (C_out,)
    returns (N, C_out, OH, OW) f32 (NCHW), or NHWC if channels_last=True.
    """
    n, c_in, h, w = x_nchw.shape
    c_out = weight.shape[0]
    k = c_in * 9

    # Conv bias cancels exactly under training-mode BatchNorm (it only shifts the batch
    # mean; the variance is unchanged), so it never enters the kernels.
    del bias

    oh = (h + 2 - 3) // 2 + 1
    ow = (w + 2 - 3) // 2 + 1
    m = n * oh * ow

    # --- patch extraction: fused identity-kernel conv, bf16, NHWC out (no transposes) ---
    patches = jax.lax.conv_general_dilated_patches(
        x_nchw.astype(jnp.bfloat16), filter_shape=(3, 3), window_strides=(2, 2),
        padding=((1, 1), (1, 1)),
        dimension_numbers=("NCHW", "OIHW", "NHWC"),
    ).reshape(m, k)                                   # feature order (c_in, kh, kw)

    # --- tiling / padding ---
    c_pad = _round_up(max(c_out, 128), 128)           # lane-dense output channels
    # Pad K to a multiple of 128 only when K is already large; for tiny K the extra
    # patch bytes would outweigh the cleaner lane-dense loads / MXU feed.
    k_pad = _round_up(k, 128) if k >= 512 else k

    # M tile: big (amortizes ~0.35us per-grid-step overhead on v5e/v6e) but clamped so
    # the "parallel" M axis always has >= 2 steps (both v7x TensorCores get work).
    tm = max(16, min(_round_up(tm, 16), _round_up(max((m + 1) // 2, 1), 16)))
    num_tiles = pl.cdiv(m, tm)
    m_pad = num_tiles * tm

    if m_pad != m or k_pad != k:
        # Zero rows/cols contribute 0 to the dot and to sum/sumsq, so BN statistics
        # (divided by the true m) stay exact.
        patches = jnp.pad(patches, ((0, m_pad - m), (0, k_pad - k)))

    w_mat = weight.reshape(c_out, k).T.astype(jnp.bfloat16)        # (K, C_out)
    w_mat = jnp.pad(w_mat, ((0, k_pad - k), (0, c_pad - c_out)))   # (K_pad, C_pad)

    # At tm<=1024 the double-buffered working sets stay far below 32 MiB for realistic
    # C_in/C_out, so this limit is safe on v7x (64 MiB physical) with headroom on v5e/v6e.
    vmem_limit = 32 * 1024 * 1024
    cparams = pltpu.CompilerParams(
        dimension_semantics=("parallel",), vmem_limit_bytes=vmem_limit)

    # Recompute the matmul in phase 2 when that is cheaper in HBM bytes than
    # round-tripping even a bf16 y (crossover near K ~ 2*C_pad).
    recompute = k_pad <= 2 * c_pad

    x_spec = pl.BlockSpec((tm, k_pad), lambda i: (i, 0))
    # Grid-invariant weight block: its block index never changes, so the pipeline keeps
    # it resident instead of re-DMAing it each step.
    w_spec = pl.BlockSpec((k_pad, c_pad), lambda i: (0, 0))
    vec_spec = pl.BlockSpec((1, c_pad), lambda i: (0, 0))
    tile_spec = pl.BlockSpec((tm, c_pad), lambda i: (i, 0))
    stats_spec = pl.BlockSpec((1, 2, c_pad), lambda i: (i, 0, 0))
    stats_shape = jax.ShapeDtypeStruct((num_tiles, 2, c_pad), jnp.float32)

    mm_flops = 2 * m_pad * k_pad * c_pad
    mm_bytes = m_pad * k_pad * 2 + k_pad * c_pad * 2
    stats_bytes = num_tiles * 2 * c_pad * 4

    # --- phase 1: conv matmul -> BN partial sums (+ bf16 y on the materialize path) ---
    if recompute:
        stats = pl.pallas_call(
            _stats_kernel,
            out_shape=stats_shape,
            grid=(num_tiles,),
            in_specs=[x_spec, w_spec],
            out_specs=stats_spec,
            compiler_params=cparams,
            cost_estimate=pl.CostEstimate(
                flops=mm_flops, transcendentals=0,
                bytes_accessed=mm_bytes + stats_bytes),
        )(patches, w_mat)
        y = None
    else:
        y, stats = pl.pallas_call(
            _conv_stats_kernel,
            out_shape=(jax.ShapeDtypeStruct((m_pad, c_pad), jnp.bfloat16),
                       stats_shape),
            grid=(num_tiles,),
            in_specs=[x_spec, w_spec],
            out_specs=(tile_spec, stats_spec),
            compiler_params=cparams,
            cost_estimate=pl.CostEstimate(
                flops=mm_flops, transcendentals=0,
                bytes_accessed=mm_bytes + m_pad * c_pad * 2 + stats_bytes),
        )(patches, w_mat)

    # --- tiny wrapper-side reduction: partial sums -> per-channel scale/shift ---
    inv_m = 1.0 / float(m)                            # true element count (N*OH*OW)
    s1 = jnp.sum(stats[:, 0, :], axis=0)
    s2 = jnp.sum(stats[:, 1, :], axis=0)
    mean = s1 * inv_m
    # TODO(synk): E[y^2]-mean^2 can cancel when |mean| >> std; switch to shifted sums if
    #             this ever feeds training-sensitive gamma/beta gradients.
    var = jnp.maximum(s2 * inv_m - mean * mean, 0.0)  # biased variance (PyTorch BN)
    rstd = jax.lax.rsqrt(var + BN_EPS)
    gamma_p = jnp.pad(gamma.astype(jnp.float32), (0, c_pad - c_out))
    beta_p = jnp.pad(beta.astype(jnp.float32), (0, c_pad - c_out))
    scale = (gamma_p * rstd).reshape(1, c_pad)
    shift = (beta_p - mean * gamma_p * rstd).reshape(1, c_pad)

    # --- phase 2: normalize + LeakyReLU ---
    if recompute:
        out_flat = pl.pallas_call(
            _matmul_bn_act_kernel,
            out_shape=jax.ShapeDtypeStruct((m_pad, c_pad), jnp.float32),
            grid=(num_tiles,),
            in_specs=[x_spec, w_spec, vec_spec, vec_spec],
            out_specs=tile_spec,
            compiler_params=cparams,
            cost_estimate=pl.CostEstimate(
                flops=mm_flops + 3 * m_pad * c_pad, transcendentals=0,
                bytes_accessed=mm_bytes + m_pad * c_pad * 4 + 2 * c_pad * 4),
        )(patches, w_mat, scale, shift)
    else:
        out_flat = pl.pallas_call(
            _bn_act_kernel,
            out_shape=jax.ShapeDtypeStruct((m_pad, c_pad), jnp.float32),
            grid=(num_tiles,),
            in_specs=[tile_spec, vec_spec, vec_spec],
            out_specs=tile_spec,
            compiler_params=cparams,
            cost_estimate=pl.CostEstimate(
                flops=3 * m_pad * c_pad, transcendentals=0,
                bytes_accessed=m_pad * c_pad * (2 + 4) + 2 * c_pad * 4),
        )(y, scale, shift)

    out_nhwc = out_flat[:m, :c_out].reshape(n, oh, ow, c_out)
    if channels_last:
        return out_nhwc                                # NHWC: skips the transpose pass
    # Slice + reshape + transpose chain fuses into a single XLA copy under jit.
    # TODO(synk): consumers that accept NHWC should call with channels_last=True.
    return out_nhwc.transpose(0, 3, 1, 2)              # NCHW (PyTorch parity)


if __name__ == "__main__":
    key = jax.random.PRNGKey(0)
    k_x, k_w, k_b = jax.random.split(key, 3)

    N, C_IN, H, W = 2, 4, 16, 16
    C_OUT = 8

    x = jax.random.normal(k_x, (N, C_IN, H, W), dtype=jnp.float32)

    # Deterministic synthetic params mirroring nn.Conv2d / nn.BatchNorm2d shapes.
    fan_in = C_IN * 9
    bound = 1.0 / (fan_in ** 0.5)
    weight = jax.random.uniform(k_w, (C_OUT, C_IN, 3, 3), jnp.float32, -bound, bound)
    bias = jax.random.uniform(k_b, (C_OUT,), jnp.float32, -bound, bound)
    gamma = jnp.ones((C_OUT,), jnp.float32)   # BatchNorm2d weight default
    beta = jnp.zeros((C_OUT,), jnp.float32)   # BatchNorm2d bias default

    fwd = jax.jit(down_conv, static_argnames=("tm", "channels_last"))
    out = fwd(x, weight, bias, gamma, beta)
    jax.block_until_ready(out)
    assert out.shape == (N, C_OUT, H // 2, W // 2)

    # Pure-JAX f32 reference (conv+bias -> batch-stat BN -> LeakyReLU).
    ref_y = jax.lax.conv_general_dilated(
        x, weight, window_strides=(2, 2), padding=((1, 1), (1, 1)),
        dimension_numbers=("NCHW", "OIHW", "NCHW"),
        precision=jax.lax.Precision.HIGHEST) + bias[None, :, None, None]
    mu = ref_y.mean(axis=(0, 2, 3), keepdims=True)
    var = ref_y.var(axis=(0, 2, 3), keepdims=True)
    ref = (ref_y - mu) * jax.lax.rsqrt(var + BN_EPS)
    ref = ref * gamma[None, :, None, None] + beta[None, :, None, None]
    ref = jnp.where(ref >= 0, ref, LEAKY_SLOPE * ref)
    err = float(jnp.max(jnp.abs(out - ref)))
    assert err < 5e-2, f"max abs err {err}"   # bf16 MXU operands -> small drift expected

    print("KERNEL_OK")
</pallas_src>

<mosaic_0001>
module attributes {stable_mosaic.version = 11 : i64} {
  func.func @_stats_kernel(%arg0: i32, %arg1: memref<64x36xbf16, #tpu.memory_space<vmem>>, %arg2: memref<36x128xbf16, #tpu.memory_space<vmem>>, %arg3: memref<1x2x128xf32, #tpu.memory_space<vmem>>) attributes {dimension_semantics = [#tpu.dimension_semantics<parallel>], iteration_bounds = array<i64: 2>, scalar_prefetch = 0 : i64, scratch_operands = 0 : i64, tpu.core_type = #tpu.core_type<tc>, window_params = [{transform_indices = @transform_0, window_bounds = array<i64: 64, 36>}, {pipeline_mode = #tpu.pipeline_mode<synchronous>, transform_indices = @transform_1, window_bounds = array<i64: 36, 128>}, {transform_indices = @transform_2, window_bounds = array<i64: 1, 2, 128>}]} {
    %c0 = arith.constant 0 : index
    %c0_0 = arith.constant 0 : index
    %0 = vector.load %arg1[%c0, %c0_0] : memref<64x36xbf16, #tpu.memory_space<vmem>>, vector<64x36xbf16>
    %c0_1 = arith.constant 0 : index
    %c0_2 = arith.constant 0 : index
    %1 = vector.load %arg2[%c0_1, %c0_2] : memref<36x128xbf16, #tpu.memory_space<vmem>>, vector<36x128xbf16>
    %cst = arith.constant dense<0.000000e+00> : vector<64x128xf32>
    %2 = tpu.matmul %0, %1, %cst {dimension_numbers = #tpu.dot_dimension_numbers<[1], [0], [0], [1], [0, 0, 1, 1], [], []>} : vector<64x36xbf16>, vector<36x128xbf16>, vector<64x128xf32> -> vector<64x128xf32>
    %cst_3 = arith.constant dense<0.000000e+00> : vector<128xf32>
    %3 = vector.multi_reduction <add>, %2, %cst_3 [0] : vector<64x128xf32> to vector<128xf32>
    %4 = vector.shape_cast %3 : vector<128xf32> to vector<1x128xf32>
    %5 = arith.mulf %2, %2 : vector<64x128xf32>
    %cst_4 = arith.constant dense<0.000000e+00> : vector<128xf32>
    %6 = vector.multi_reduction <add>, %5, %cst_4 [0] : vector<64x128xf32> to vector<128xf32>
    %7 = vector.shape_cast %6 : vector<128xf32> to vector<1x128xf32>
    %8 = tpu.concatenate %4, %7 in 0 : vector<1x128xf32>, vector<1x128xf32> -> vector<2x128xf32>
    %c0_5 = arith.constant 0 : index
    %c0_6 = arith.constant 0 : index
    %c0_7 = arith.constant 0 : index
    %9 = vector.load %arg3[%c0_5, %c0_6, %c0_7] : memref<1x2x128xf32, #tpu.memory_space<vmem>>, vector<1x2x128xf32>
    %10 = vector.shape_cast %9 : vector<1x2x128xf32> to vector<2x128xf32>
    %11 = vector.shape_cast %8 : vector<2x128xf32> to vector<1x2x128xf32>
    tpu.vector_store %arg3[%c0_5, %c0_6, %c0_7], %11 {strides = array<i32>} : memref<1x2x128xf32, #tpu.memory_space<vmem>>, vector<1x2x128xf32>,
    return
  }
  func.func @transform_0(%arg0: i32) -> (i32, i32) {
    %c0_i32 = arith.constant 0 : i32
    %c0_i32_0 = arith.constant 0 : i32
    return %arg0, %c0_i32 : i32, i32
  }
  func.func @transform_1(%arg0: i32) -> (i32, i32) {
    %c0_i32 = arith.constant 0 : i32
    %c0_i32_0 = arith.constant 0 : i32
    %c0_i32_1 = arith.constant 0 : i32
    return %c0_i32, %c0_i32_0 : i32, i32
  }
  func.func @transform_2(%arg0: i32) -> (i32, i32, i32) {
    %c0_i32 = arith.constant 0 : i32
    %c0_i32_0 = arith.constant 0 : i32
    %c0_i32_1 = arith.constant 0 : i32
    return %arg0, %c0_i32, %c0_i32_0 : i32, i32, i32
  }
}

module attributes {stable_mosaic.version = 11 : i64} {
  func.func @_matmul_bn_act_kernel(%arg0: i32, %arg1: memref<64x36xbf16, #tpu.memory_space<vmem>>, %arg2: memref<36x128xbf16, #tpu.memory_space<vmem>>, %arg3: memref<1x128xf32, #tpu.memory_space<vmem>>, %arg4: memref<1x128xf32, #tpu.memory_space<vmem>>, %arg5: memref<64x128xf32, #tpu.memory_space<vmem>>) attributes {dimension_semantics = [#tpu.dimension_semantics<parallel>], iteration_bounds = array<i64: 2>, scalar_prefetch = 0 : i64, scratch_operands = 0 : i64, tpu.core_type = #tpu.core_type<tc>, window_params = [{transform_indices = @transform_0, window_bounds = array<i64: 64, 36>}, {pipeline_mode = #tpu.pipeline_mode<synchronous>, transform_indices = @transform_1, window_bounds = array<i64: 36, 128>}, {pipeline_mode = #tpu.pipeline_mode<synchronous>, transform_indices = @transform_2, window_bounds = array<i64: 1, 128>}, {pipeline_mode = #tpu.pipeline_mode<synchronous>, transform_indices = @transform_3, window_bounds = array<i64: 1, 128>}, {transform_indices = @transform_4, window_bounds = array<i64: 64, 128>}]} {
    %c0 = arith.constant 0 : index
    %c0_0 = arith.constant 0 : index
    %0 = vector.load %arg1[%c0, %c0_0] : memref<64x36xbf16, #tpu.memory_space<vmem>>, vector<64x36xbf16>
    %c0_1 = arith.constant 0 : index
    %c0_2 = arith.constant 0 : index
    %1 = vector.load %arg2[%c0_1, %c0_2] : memref<36x128xbf16, #tpu.memory_space<vmem>>, vector<36x128xbf16>
    %cst = arith.constant dense<0.000000e+00> : vector<64x128xf32>
    %2 = tpu.matmul %0, %1, %cst {dimension_numbers = #tpu.dot_dimension_numbers<[1], [0], [0], [1], [0, 0, 1, 1], [], []>} : vector<64x36xbf16>, vector<36x128xbf16>, vector<64x128xf32> -> vector<64x128xf32>
    %c0_3 = arith.constant 0 : index
    %c0_4 = arith.constant 0 : index
    %3 = vector.load %arg3[%c0_3, %c0_4] : memref<1x128xf32, #tpu.memory_space<vmem>>, vector<1x128xf32>
    %4 = vector.broadcast %3 : vector<1x128xf32> to vector<64x128xf32>
    %5 = arith.mulf %2, %4 : vector<64x128xf32>
    %c0_5 = arith.constant 0 : index
    %c0_6 = arith.constant 0 : index
    %6 = vector.load %arg4[%c0_5, %c0_6] : memref<1x128xf32, #tpu.memory_space<vmem>>, vector<1x128xf32>
    %7 = vector.broadcast %6 : vector<1x128xf32> to vector<64x128xf32>
    %8 = arith.addf %5, %7 : vector<64x128xf32>
    %cst_7 = arith.constant 0.00999999977 : f32
    %9 = vector.broadcast %cst_7 : f32 to vector<64x128xf32>
    %10 = arith.mulf %9, %8 : vector<64x128xf32>
    %11 = arith.maximumf %8, %10 : vector<64x128xf32>
    %c0_8 = arith.constant 0 : index
    %c0_9 = arith.constant 0 : index
    %12 = vector.load %arg5[%c0_8, %c0_9] : memref<64x128xf32, #tpu.memory_space<vmem>>, vector<64x128xf32>
    tpu.vector_store %arg5[%c0_8, %c0_9], %11 {strides = array<i32>} : memref<64x128xf32, #tpu.memory_space<vmem>>, vector<64x128xf32>,
    return
  }
  func.func @transform_0(%arg0: i32) -> (i32, i32) {
    %c0_i32 = arith.constant 0 : i32
    %c0_i32_0 = arith.constant 0 : i32
    return %arg0, %c0_i32 : i32, i32
  }
  func.func @transform_1(%arg0: i32) -> (i32, i32) {
    %c0_i32 = arith.constant 0 : i32
    %c0_i32_0 = arith.constant 0 : i32
    %c0_i32_1 = arith.constant 0 : i32
    return %c0_i32, %c0_i32_0 : i32, i32
  }
  func.func @transform_2(%arg0: i32) -> (i32, i32) {
    %c0_i32 = arith.constant 0 : i32
    %c0_i32_0 = arith.constant 0 : i32
    %c0_i32_1 = arith.constant 0 : i32
    return %c0_i32, %c0_i32_0 : i32, i32
  }
  func.func @transform_3(%arg0: i32) -> (i32, i32) {
    %c0_i32 = arith.constant 0 : i32
    %c0_i32_0 = arith.constant 0 : i32
    %c0_i32_1 = arith.constant 0 : i32
    return %c0_i32, %c0_i32_0 : i32, i32
  }
  func.func @transform_4(%arg0: i32) -> (i32, i32) {
    %c0_i32 = arith.constant 0 : i32
    %c0_i32_0 = arith.constant 0 : i32
    return %arg0, %c0_i32 : i32, i32
  }
}

</mosaic_0001>

<llo_original>
// kernel: down_conv.2
$region0: #{down_conv.2}
  #allocation0 [shape = 'u32[]', space=smem, size = 0x4, offset = 0x4, fixed_abs, tag = 'smem constant byte address 0x4 - core index']
  #allocation1 [shape = 'u32[72,128]{1,0:T(1,128)}', space=vmem, size = 0x9000, scoped, tag = 'internal scratch']
  %s0 = inlined_call_operand.vmem [shape: bf16[128,36], index: 0, kind: input, shape index: {}]
  %s1 = inlined_call_operand.vmem [shape: bf16[36,128], index: 1, kind: input, shape index: {}]
  %s2 = inlined_call_operand.vmem [shape: f32[2,2,128], index: 2, kind: output, shape index: {}]
  %s3 = sld [smem:[#allocation0]]
  $region41: #{down_conv.2} parent=0
    _
  %s5 = ssub.s32 1, %s3
  %s6 = scalar_select 0, %s5, %s3
  loop: start=0, step=1, limit=4
  $region2: #{down_conv.2} parent=0 // loop_pre_header
    _
  $region3: #{down_conv.2} parent=0 // loop_header
    %s8 = sphi 0, %s12
    %p9 = scmp.ge.s32.totalorder %s8, 4
    %s18 = sphi 0, %s20
    %s21 = sphi 0, %s18
    %s22 = sphi 0, %s21
    %s38 = sphi 0, %s22
    %s42 = sphi 0, %s42
    %s44 = sphi 0, %s42
    %s45 = sphi 0, %s44
    %s59 = sphi 0, %s45
    %s65 = sphi 0, %s67
    %s68 = sphi 0, %s65
    %s69 = sphi 0, %s68
    %s85 = sphi 0, %s69
  $region4: #{down_conv.2} parent=0 // loop_header_branch
    %11 = sbr.rel (%p9) target = $region8
  $region5: #{down_conv.2} parent=0 // loop_body
    %s13 = ssub.s32 %s8, 1
    %s14 = ssub.s32 %s8, 2
    %s15 = sadd.s32 %s8, 1
    %s16 = ssub.s32 %s8, %s15
    %p17 = scmp.eq.s32.totalorder %s16, 0
    %s19 = sadd.s32 %s18, 1
    %s20 = scalar_select %p17, %s18, %s19
    %p23 = pneg %p17
    %p24 = scmp.eq.s32.totalorder %s8, 1
    %p25 = por %p23, %p24
    %p26 = scmp.ne.s32.totalorder %s18, %s21
    %p27 = scmp.eq.s32.totalorder %s8, 0
    %p28 = por %p26, %p27
    %p29 = scmp.ne.s32.totalorder %s18, %s21
    %p30 = scmp.eq.s32.totalorder %s13, 1
    %p31 = por %p29, %p30
    %p32 = scmp.ne.s32.totalorder %s21, %s22
    %p33 = scmp.eq.s32.totalorder %s13, 0
    %p34 = por %p32, %p33
    %p35 = scmp.ne.s32.totalorder %s21, %s22
    %p36 = scmp.eq.s32.totalorder %s14, 1
    %p37 = por %p35, %p36
    %p39 = scmp.ne.s32.totalorder %s22, %s38
    %p40 = scmp.eq.s32.totalorder %s14, 0
    %p41 = por %p39, %p40
    %s43 = sadd.s32 %s42, 1
    %p46 = scmp.eq.s32.totalorder %s8, 1
    %p47 = scmp.ne.s32.totalorder %s42, %s44
    %p48 = scmp.eq.s32.totalorder %s8, 0
    %p49 = por %p47, %p48
    %p50 = scmp.ne.s32.totalorder %s42, %s44
    %p51 = scmp.eq.s32.totalorder %s13, 1
    %p52 = por %p50, %p51
    %p53 = scmp.ne.s32.totalorder %s44, %s45
    %p54 = scmp.eq.s32.totalorder %s13, 0
    %p55 = por %p53, %p54
    %p56 = scmp.ne.s32.totalorder %s44, %s45
    %p57 = scmp.eq.s32.totalorder %s14, 1
    %p58 = por %p56, %p57
    %p60 = scmp.ne.s32.totalorder %s45, %s59
    %p61 = scmp.eq.s32.totalorder %s14, 0
    %p62 = por %p60, %p61
    %s63 = ssub.s32 %s8, %s15
    %p64 = scmp.eq.s32.totalorder %s63, 0
    %s66 = sadd.s32 %s65, 1
    %s67 = scalar_select %p64, %s65, %s66
    %p70 = pneg %p64
    %p71 = scmp.eq.s32.totalorder %s8, 1
    %p72 = por %p70, %p71
    %p73 = scmp.ne.s32.totalorder %s65, %s68
    %p74 = scmp.eq.s32.totalorder %s8, 0
    %p75 = por %p73, %p74
    %p76 = scmp.ne.s32.totalorder %s65, %s68
    %p77 = scmp.eq.s32.totalorder %s13, 1
    %p78 = por %p76, %p77
    %p79 = scmp.ne.s32.totalorder %s68, %s69
    %p80 = scmp.eq.s32.totalorder %s13, 0
    %p81 = por %p79, %p80
    %p82 = scmp.ne.s32.totalorder %s68, %s69
    %p83 = scmp.eq.s32.totalorder %s14, 1
    %p84 = por %p82, %p83
    %p86 = scmp.ne.s32.totalorder %s69, %s85
    %p87 = scmp.eq.s32.totalorder %s14, 0
    %p88 = por %p86, %p87
    %p89 = scmp.le.s32.totalorder 1, %s8
    %p90 = scmp.lt.s32.totalorder %s8, 3
    %p91 = pnand %p89, %p90
    %p92 = pneg %p91
    // Predicated region
    $region9: #{down_conv.2} parent=5 // pred_check
      _
    $region10: #{down_conv.2} parent=5 // pred_check_branch
      %94 = sbr.rel (%p91) target = $region12
    $region11: #{down_conv.2} parent=5 // pred_region
      %s95 = ssub.s32 %s8, 1
      // Predicated region
      $region13: #{down_conv.2} parent=11 // pred_check
        %p96 = pneg %p55
      $region14: #{down_conv.2} parent=11 // pred_check_branch
        %98 = sbr.rel (%p96) target = $region16
      $region15: #{down_conv.2} parent=11 // pred_region
        _
      $region16: #{down_conv.2} parent=11 // pred_fallthru
        _
    $region12: #{down_conv.2} parent=5 // pred_fallthru
      _
    %p99 = scmp.lt.s32.totalorder %s8, 2
    // Predicated region
    $region17: #{down_conv.2} parent=5 // pred_check
      %p100 = pneg %p99
    $region18: #{down_conv.2} parent=5 // pred_check_branch
      %102 = sbr.rel (%p100) target = $region20
    $region19: #{down_conv.2} parent=5 // pred_region
      // Predicated region
      $region21: #{down_conv.2} parent=19 // pred_check
        %p103 = pneg %p28
      $region22: #{down_conv.2} parent=19 // pred_check_branch
        %105 = sbr.rel (%p103) target = $region24
      $region23: #{down_conv.2} parent=19 // pred_region
        %s106 = smul.u32 8, %s8
        %p107 = scmp.lt.s32.totalorder %s106, 15
        %s108 = scalar_select %p107, %s106, 15
        %s109 = smul.addr %s108, 4
        %s110 = scalar_lea.vmem %s0, %s109
        %s111 = smul.u32 8, %s8
      $region24: #{down_conv.2} parent=19 // pred_fallthru
        _
    $region20: #{down_conv.2} parent=5 // pred_fallthru
      _
    %p112 = scmp.le.s32.totalorder 1, %s8
    %p113 = scmp.lt.s32.totalorder %s8, 3
    %p114 = pnand %p112, %p113
    %p115 = pneg %p114
    // Predicated region
    $region25: #{down_conv.2} parent=5 // pred_check
      _
    $region26: #{down_conv.2} parent=5 // pred_check_branch
      %117 = sbr.rel (%p114) target = $region28
    $region27: #{down_conv.2} parent=5 // pred_region
      %s118 = ssub.s32 %s8, 1
      %s119 = smul.u32 8, %s13
      %p120 = scmp.lt.s32.totalorder %s119, 15
      %s121 = scalar_select %p120, %s119, 15
      %s122 = smul.addr %s121, 4
      %s123 = scalar_lea.vmem %s0, %s122
      %p124 = pneg %p34
      %p125 = pneg %p31
      %p126 = pneg %p55
      %p127 = pneg %p52
      %p128 = pneg %p81
      %p129 = pneg %p78
      %p130 = scmp.lt.s32.totalorder %s13, 1
      %s131 = scalar_select %p130, %s13, 1
      %s132 = smul.addr %s131, 2
      %s133 = scalar_lea.vmem %s2, %s132
      %s134 = smul.u32 8, %s13
      %p135 = scmp.lt.s32.totalorder %s134, 15
      %s136 = scalar_select %p135, %s134, 15
      %s137 = smul.addr %s136, 4
      %s138 = scalar_lea.vmem %s0, %s137
      %s139 = smul.u32 8, %s13
      %p140 = scmp.lt.s32.totalorder %s13, 1
      %s141 = scalar_select %p140, %s13, 1
      %s142 = smul.addr %s141, 2
      %s143 = scalar_lea.vmem %s2, %s142
      %v145 = vld [vmem:[%s138] sm:$0xf]
      %v146 = vld [vmem:[%s138 + $0x4] sm:$0xf]
      %v147 = vld [vmem:[%s138 + $0x8] sm:$0xf]
      %v148 = vld [vmem:[%s138 + $0xc] sm:$0xf]
      %v149 = vld [vmem:[%s138 + $0x10] sm:$0xf]
      %v150 = vld [vmem:[%s138 + $0x14] sm:$0xf]
      %v151 = vld [vmem:[%s138 + $0x18] sm:$0xf]
      %v152 = vld [vmem:[%s138 + $0x1c] sm:$0xf]
      %v153 = vld [vmem:[%s1] sm:$0xf]
      %v154 = vld [vmem:[%s1 + $0x4] sm:$0xf]
      %v155 = vld [vmem:[%s1 + $0x8] sm:$0xf]
      %v156 = vld [vmem:[%s1 + $0xc] sm:$0xf]
      %v157 = vld [vmem:[%s1 + $0x10] sm:$0x3]
      %v166 = vunpack.c.l.b16 %v145
      %v167 = vunpack.c.l.b16 %v146
      %v168 = vunpack.c.l.b16 %v147
      %v169 = vunpack.c.l.b16 %v148
      %v170 = vunpack.c.l.b16 %v149
      %v171 = vunpack.c.l.b16 %v150
      %v172 = vunpack.c.l.b16 %v151
      %v173 = vunpack.c.l.b16 %v152
      %v174 = vpack.c.b16 %v167, %v166
      %v175 = vpack.c.b16 %v169, %v168
      %v176 = vpack.c.b16 %v171, %v170
      %v177 = vpack.c.b16 %v173, %v172
      %v183 = vunpack.c.l.b16 %v153
      %v184 = vunpack.c.l.b16 %v154
      %v185 = vunpack.c.l.b16 %v155
      %v186 = vunpack.c.l.b16 %v156
      %v187 = vunpack.c.l.b16 %v157
      %v188 = vpack.c.b16 %v184, %v183
      %v189 = vpack.c.b16 %v186, %v185
      %v190 = vpack.c.b16 %v187, %v187
      %vm193 = vcmask 293888
      %v195 = vsel %vm193, %v174, 0
      %v198 = vsel %vm193, %v175, 0
      %v201 = vsel %vm193, %v176, 0
      %v204 = vsel %vm193, %v177, 0
      %vm206 = vcmask 1041408
      %v208 = vsel %vm206, %v190, 0
      %210 = vmatpush.bf16.msra.mxu0 0
      %211 = vmatpush.bf16.msra.mxu0 0
      %212 = vmatpush.bf16.msra.mxu0 0
      %213 = vmatpush.bf16.msra.mxu0 0
      %214 = vmatpush.bf16.msra.mxu0 0
      %215 = vmatpush.bf16.msra.mxu0 %v208
      %216 = vmatpush.bf16.msra.mxu0 %v189
      %217 = vmatpush.bf16.msra.mxu0 %v188
      %218 = vmatmul.bf16.gmra.mxu0 %v195
      %v219 = vpop.f32.mrf.mxu0
      %v220 = vadd.f32 0.0, %v219
      %v221 = vpop.f32.mrf.mxu0
      %v222 = vadd.f32 0.0, %v221
      %223 = vmatmul.bf16.gmra.mxu0 %v198
      %v224 = vpop.f32.mrf.mxu0
      %v225 = vadd.f32 0.0, %v224
      %v226 = vpop.f32.mrf.mxu0
      %v227 = vadd.f32 0.0, %v226
      %228 = vmatmul.bf16.gmra.mxu0 %v201
      %v229 = vpop.f32.mrf.mxu0
      %v230 = vadd.f32 0.0, %v229
      %v231 = vpop.f32.mrf.mxu0
      %v232 = vadd.f32 0.0, %v231
      %233 = vmatmul.bf16.gmra.mxu0 %v204
      %v234 = vpop.f32.mrf.mxu0
      %v235 = vadd.f32 0.0, %v234
      %v236 = vpop.f32.mrf.mxu0
      %v237 = vadd.f32 0.0, %v236
      %238 = vdwg.mxu0
      %v239 = vadd.f32 %v220, %v222
      %v240 = vadd.f32 %v239, %v225
      %v241 = vadd.f32 %v240, %v227
      %v242 = vadd.f32 %v241, %v230
      %v243 = vadd.f32 %v242, %v232
      %v244 = vadd.f32 %v243, %v235
      %v245 = vadd.f32 %v244, %v237
      %v246 = vrot.slane %v245, 4
      %v247 = vadd.f32 %v245, %v246
      %v248 = vrot.slane %v247, 2
      %v249 = vadd.f32 %v247, %v248
      %v250 = vrot.slane %v249, 1
      %v251 = vadd.f32 %v249, %v250
      %v252 = vmul.f32 %v220, %v220
      %v253 = vmul.f32 %v222, %v222
      %v254 = vmul.f32 %v225, %v225
      %v255 = vmul.f32 %v227, %v227
      %v256 = vmul.f32 %v230, %v230
      %v257 = vmul.f32 %v232, %v232
      %v258 = vmul.f32 %v235, %v235
      %v259 = vmul.f32 %v237, %v237
      %v260 = vadd.f32 %v252, %v253
      %v261 = vadd.f32 %v260, %v254
      %v262 = vadd.f32 %v261, %v255
      %v263 = vadd.f32 %v262, %v256
      %v264 = vadd.f32 %v263, %v257
      %v265 = vadd.f32 %v264, %v258
      %v266 = vadd.f32 %v265, %v259
      %v267 = vrot.slane %v266, 4
      %v268 = vadd.f32 %v266, %v267
      %v269 = vrot.slane %v268, 2
      %v270 = vadd.f32 %v268, %v269
      %v271 = vrot.slane %v270, 1
      %v272 = vadd.f32 %v270, %v271
      %vm273 = vcmask 1040384
      %v274 = vsel %vm273, %v251, %v272
      %275 = vst [vmem:[%s143] sm:$0x3] %v274
      %p276 = scmp.lt.s32.totalorder %s13, 1
      %s277 = scalar_select %p276, %s13, 1
      %s278 = smul.addr %s277, 2
      %s279 = scalar_lea.vmem %s2, %s278
      // Predicated region
      $region29: #{down_conv.2} parent=27 // pred_check
        %p280 = pneg %p78
      $region30: #{down_conv.2} parent=27 // pred_check_branch
        %282 = sbr.rel (%p280) target = $region32
      $region31: #{down_conv.2} parent=27 // pred_region
        _
      $region32: #{down_conv.2} parent=27 // pred_fallthru
        _
    $region28: #{down_conv.2} parent=5 // pred_fallthru
      _
    %p283 = scmp.le.s32.totalorder 2, %s8
    // Predicated region
    $region33: #{down_conv.2} parent=5 // pred_check
      %p284 = pneg %p283
    $region34: #{down_conv.2} parent=5 // pred_check_branch
      %286 = sbr.rel (%p284) target = $region36
    $region35: #{down_conv.2} parent=5 // pred_region
      %s287 = ssub.s32 %s8, 2
      // Predicated region
      $region37: #{down_conv.2} parent=35 // pred_check
        %p288 = pneg %p84
      $region38: #{down_conv.2} parent=35 // pred_check_branch
        %290 = sbr.rel (%p288) target = $region40
      $region39: #{down_conv.2} parent=35 // pred_region
        %p291 = scmp.lt.s32.totalorder %s14, 1
        %s292 = scalar_select %p291, %s14, 1
        %s293 = smul.addr %s292, 2
        %s294 = scalar_lea.vmem %s2, %s293
      $region40: #{down_conv.2} parent=35 // pred_fallthru
        _
    $region36: #{down_conv.2} parent=5 // pred_fallthru
      _
  $region6: #{down_conv.2} parent=0 // loop_footer
    %s12 = sadd.s32 1, %s8
  $region7: #{down_conv.2} parent=0 // loop_footer_branch
    %7 = sbr.rel target = $region3
  $region8: #{down_conv.2} parent=0 // loop_exit
    _

// kernel: down_conv.3
$region0: #{down_conv.3}
  #allocation0 [shape = 'u32[]', space=smem, size = 0x4, offset = 0x4, fixed_abs, tag = 'smem constant byte address 0x4 - core index']
  #allocation1 [shape = 'u32[72,128]{1,0:T(1,128)}', space=vmem, size = 0x9000, scoped, tag = 'internal scratch']
  %s0 = inlined_call_operand.vmem [shape: bf16[128,36], index: 0, kind: input, shape index: {}]
  %s1 = inlined_call_operand.vmem [shape: bf16[36,128], index: 1, kind: input, shape index: {}]
  %s2 = inlined_call_operand.vmem [shape: f32[1,128], index: 2, kind: input, shape index: {}]
  %s3 = inlined_call_operand.vmem [shape: f32[1,128], index: 3, kind: input, shape index: {}]
  %s4 = inlined_call_operand.vmem [shape: f32[128,128], index: 4, kind: output, shape index: {}]
  %s5 = sld [smem:[#allocation0]]
  $region49: #{down_conv.3} parent=0
    _
  %s7 = ssub.s32 1, %s5
  %s8 = scalar_select 0, %s7, %s5
  loop: start=0, step=1, limit=4
  $region2: #{down_conv.3} parent=0 // loop_pre_header
    _
  $region3: #{down_conv.3} parent=0 // loop_header
    %s10 = sphi 0, %s14
    %p11 = scmp.ge.s32.totalorder %s10, 4
    %s20 = sphi 0, %s22
    %s23 = sphi 0, %s20
    %s24 = sphi 0, %s23
    %s40 = sphi 0, %s24
    %s44 = sphi 0, %s44
    %s46 = sphi 0, %s44
    %s47 = sphi 0, %s46
    %s61 = sphi 0, %s47
    %s65 = sphi 0, %s65
    %s67 = sphi 0, %s65
    %s68 = sphi 0, %s67
    %s82 = sphi 0, %s68
    %s86 = sphi 0, %s86
    %s88 = sphi 0, %s86
    %s89 = sphi 0, %s88
    %s103 = sphi 0, %s89
    %s109 = sphi 0, %s111
    %s112 = sphi 0, %s109
    %s113 = sphi 0, %s112
    %s129 = sphi 0, %s113
  $region4: #{down_conv.3} parent=0 // loop_header_branch
    %13 = sbr.rel (%p11) target = $region8
  $region5: #{down_conv.3} parent=0 // loop_body
    %s15 = ssub.s32 %s10, 1
    %s16 = ssub.s32 %s10, 2
    %s17 = sadd.s32 %s10, 1
    %s18 = ssub.s32 %s10, %s17
    %p19 = scmp.eq.s32.totalorder %s18, 0
    %s21 = sadd.s32 %s20, 1
    %s22 = scalar_select %p19, %s20, %s21
    %p25 = pneg %p19
    %p26 = scmp.eq.s32.totalorder %s10, 1
    %p27 = por %p25, %p26
    %p28 = scmp.ne.s32.totalorder %s20, %s23
    %p29 = scmp.eq.s32.totalorder %s10, 0
    %p30 = por %p28, %p29
    %p31 = scmp.ne.s32.totalorder %s20, %s23
    %p32 = scmp.eq.s32.totalorder %s15, 1
    %p33 = por %p31, %p32
    %p34 = scmp.ne.s32.totalorder %s23, %s24
    %p35 = scmp.eq.s32.totalorder %s15, 0
    %p36 = por %p34, %p35
    %p37 = scmp.ne.s32.totalorder %s23, %s24
    %p38 = scmp.eq.s32.totalorder %s16, 1
    %p39 = por %p37, %p38
    %p41 = scmp.ne.s32.totalorder %s24, %s40
    %p42 = scmp.eq.s32.totalorder %s16, 0
    %p43 = por %p41, %p42
    %s45 = sadd.s32 %s44, 1
    %p48 = scmp.eq.s32.totalorder %s10, 1
    %p49 = scmp.ne.s32.totalorder %s44, %s46
    %p50 = scmp.eq.s32.totalorder %s10, 0
    %p51 = por %p49, %p50
    %p52 = scmp.ne.s32.totalorder %s44, %s46
    %p53 = scmp.eq.s32.totalorder %s15, 1
    %p54 = por %p52, %p53
    %p55 = scmp.ne.s32.totalorder %s46, %s47
    %p56 = scmp.eq.s32.totalorder %s15, 0
    %p57 = por %p55, %p56
    %p58 = scmp.ne.s32.totalorder %s46, %s47
    %p59 = scmp.eq.s32.totalorder %s16, 1
    %p60 = por %p58, %p59
    %p62 = scmp.ne.s32.totalorder %s47, %s61
    %p63 = scmp.eq.s32.totalorder %s16, 0
    %p64 = por %p62, %p63
    %s66 = sadd.s32 %s65, 1
    %p69 = scmp.eq.s32.totalorder %s10, 1
    %p70 = scmp.ne.s32.totalorder %s65, %s67
    %p71 = scmp.eq.s32.totalorder %s10, 0
    %p72 = por %p70, %p71
    %p73 = scmp.ne.s32.totalorder %s65, %s67
    %p74 = scmp.eq.s32.totalorder %s15, 1
    %p75 = por %p73, %p74
    %p76 = scmp.ne.s32.totalorder %s67, %s68
    %p77 = scmp.eq.s32.totalorder %s15, 0
    %p78 = por %p76, %p77
    %p79 = scmp.ne.s32.totalorder %s67, %s68
    %p80 = scmp.eq.s32.totalorder %s16, 1
    %p81 = por %p79, %p80
    %p83 = scmp.ne.s32.totalorder %s68, %s82
    %p84 = scmp.eq.s32.totalorder %s16, 0
    %p85 = por %p83, %p84
    %s87 = sadd.s32 %s86, 1
    %p90 = scmp.eq.s32.totalorder %s10, 1
    %p91 = scmp.ne.s32.totalorder %s86, %s88
    %p92 = scmp.eq.s32.totalorder %s10, 0
    %p93 = por %p91, %p92
    %p94 = scmp.ne.s32.totalorder %s86, %s88
    %p95 = scmp.eq.s32.totalorder %s15, 1
    %p96 = por %p94, %p95
    %p97 = scmp.ne.s32.totalorder %s88, %s89
    %p98 = scmp.eq.s32.totalorder %s15, 0
    %p99 = por %p97, %p98
    %p100 = scmp.ne.s32.totalorder %s88, %s89
    %p101 = scmp.eq.s32.totalorder %s16, 1
    %p102 = por %p100, %p101
    %p104 = scmp.ne.s32.totalorder %s89, %s103
    %p105 = scmp.eq.s32.totalorder %s16, 0
    %p106 = por %p104, %p105
    %s107 = ssub.s32 %s10, %s17
    %p108 = scmp.eq.s32.totalorder %s107, 0
    %s110 = sadd.s32 %s109, 1
    %s111 = scalar_select %p108, %s109, %s110
    %p114 = pneg %p108
    %p115 = scmp.eq.s32.totalorder %s10, 1
    %p116 = por %p114, %p115
    %p117 = scmp.ne.s32.totalorder %s109, %s112
    %p118 = scmp.eq.s32.totalorder %s10, 0
    %p119 = por %p117, %p118
    %p120 = scmp.ne.s32.totalorder %s109, %s112
    %p121 = scmp.eq.s32.totalorder %s15, 1
    %p122 = por %p120, %p121
    %p123 = scmp.ne.s32.totalorder %s112, %s113
    %p124 = scmp.eq.s32.totalorder %s15, 0
    %p125 = por %p123, %p124
    %p126 = scmp.ne.s32.totalorder %s112, %s113
    %p127 = scmp.eq.s32.totalorder %s16, 1
    %p128 = por %p126, %p127
    %p130 = scmp.ne.s32.totalorder %s113, %s129
    %p131 = scmp.eq.s32.totalorder %s16, 0
    %p132 = por %p130, %p131
    %p133 = scmp.le.s32.totalorder 1, %s10
    %p134 = scmp.lt.s32.totalorder %s10, 3
    %p135 = pnand %p133, %p134
    %p136 = pneg %p135
    // Predicated region
    $region9: #{down_conv.3} parent=5 // pred_check
      _
    $region10: #{down_conv.3} parent=5 // pred_check_branch
      %138 = sbr.rel (%p135) target = $region12
    $region11: #{down_conv.3} parent=5 // pred_region
      %s139 = ssub.s32 %s10, 1
      // Predicated region
      $region13: #{down_conv.3} parent=11 // pred_check
        %p140 = pneg %p57
      $region14: #{down_conv.3} parent=11 // pred_check_branch
        %142 = sbr.rel (%p140) target = $region16
      $region15: #{down_conv.3} parent=11 // pred_region
        _
      $region16: #{down_conv.3} parent=11 // pred_fallthru
        _
      // Predicated region
      $region17: #{down_conv.3} parent=11 // pred_check
        %p143 = pneg %p78
      $region18: #{down_conv.3} parent=11 // pred_check_branch
        %145 = sbr.rel (%p143) target = $region20
      $region19: #{down_conv.3} parent=11 // pred_region
        _
      $region20: #{down_conv.3} parent=11 // pred_fallthru
        _
      // Predicated region
      $region21: #{down_conv.3} parent=11 // pred_check
        %p146 = pneg %p99
      $region22: #{down_conv.3} parent=11 // pred_check_branch
        %148 = sbr.rel (%p146) target = $region24
      $region23: #{down_conv.3} parent=11 // pred_region
        _
      $region24: #{down_conv.3} parent=11 // pred_fallthru
        _
    $region12: #{down_conv.3} parent=5 // pred_fallthru
      _
    %p149 = scmp.lt.s32.totalorder %s10, 2
    // Predicated region
    $region25: #{down_conv.3} parent=5 // pred_check
      %p150 = pneg %p149
    $region26: #{down_conv.3} parent=5 // pred_check_branch
      %152 = sbr.rel (%p150) target = $region28
    $region27: #{down_conv.3} parent=5 // pred_region
      // Predicated region
      $region29: #{down_conv.3} parent=27 // pred_check
        %p153 = pneg %p30
      $region30: #{down_conv.3} parent=27 // pred_check_branch
        %155 = sbr.rel (%p153) target = $region32
      $region31: #{down_conv.3} parent=27 // pred_region
        %s156 = smul.u32 8, %s10
        %p157 = scmp.lt.s32.totalorder %s156, 15
        %s158 = scalar_select %p157, %s156, 15
        %s159 = smul.addr %s158, 4
        %s160 = scalar_lea.vmem %s0, %s159
        %s161 = smul.u32 8, %s10
      $region32: #{down_conv.3} parent=27 // pred_fallthru
        _
    $region28: #{down_conv.3} parent=5 // pred_fallthru
      _
    %p162 = scmp.le.s32.totalorder 1, %s10
    %p163 = scmp.lt.s32.totalorder %s10, 3
    %p164 = pnand %p162, %p163
    %p165 = pneg %p164
    // Predicated region
    $region33: #{down_conv.3} parent=5 // pred_check
      _
    $region34: #{down_conv.3} parent=5 // pred_check_branch
      %167 = sbr.rel (%p164) target = $region36
    $region35: #{down_conv.3} parent=5 // pred_region
      %s168 = ssub.s32 %s10, 1
      %s169 = smul.u32 8, %s15
      %p170 = scmp.lt.s32.totalorder %s169, 15
      %s171 = scalar_select %p170, %s169, 15
      %s172 = smul.addr %s171, 4
      %s173 = scalar_lea.vmem %s0, %s172
      %p174 = pneg %p36
      %p175 = pneg %p33
      %p176 = pneg %p57
      %p177 = pneg %p54
      %p178 = pneg %p78
      %p179 = pneg %p75
      %p180 = pneg %p99
      %p181 = pneg %p96
      %p182 = pneg %p125
      %p183 = pneg %p122
      %s184 = smul.u32 8, %s15
      %p185 = scmp.lt.s32.totalorder %s184, 15
      %s186 = scalar_select %p185, %s184, 15
      %s187 = smul.addr %s186, 8
      %s188 = scalar_lea.vmem %s4, %s187
      %s189 = smul.u32 8, %s15
      %p190 = scmp.lt.s32.totalorder %s189, 15
      %s191 = scalar_select %p190, %s189, 15
      %s192 = smul.addr %s191, 4
      %s193 = scalar_lea.vmem %s0, %s192
      %s194 = smul.u32 8, %s15
      %s195 = smul.u32 8, %s15
      %p196 = scmp.lt.s32.totalorder %s195, 15
      %s197 = scalar_select %p196, %s195, 15
      %s198 = smul.addr %s197, 8
      %s199 = scalar_lea.vmem %s4, %s198
      %s200 = smul.u32 8, %s15
      %v202 = vld [vmem:[%s193] sm:$0xf]
      %v203 = vld [vmem:[%s193 + $0x4] sm:$0xf]
      %v204 = vld [vmem:[%s193 + $0x8] sm:$0xf]
      %v205 = vld [vmem:[%s193 + $0xc] sm:$0xf]
      %v206 = vld [vmem:[%s193 + $0x10] sm:$0xf]
      %v207 = vld [vmem:[%s193 + $0x14] sm:$0xf]
      %v208 = vld [vmem:[%s193 + $0x18] sm:$0xf]
      %v209 = vld [vmem:[%s193 + $0x1c] sm:$0xf]
      %v210 = vld [vmem:[%s1] sm:$0xf]
      %v211 = vld [vmem:[%s1 + $0x4] sm:$0xf]
      %v212 = vld [vmem:[%s1 + $0x8] sm:$0xf]
      %v213 = vld [vmem:[%s1 + $0xc] sm:$0xf]
      %v214 = vld [vmem:[%s1 + $0x10] sm:$0x3]
      %v223 = vunpack.c.l.b16 %v202
      %v224 = vunpack.c.l.b16 %v203
      %v225 = vunpack.c.l.b16 %v204
      %v226 = vunpack.c.l.b16 %v205
      %v227 = vunpack.c.l.b16 %v206
      %v228 = vunpack.c.l.b16 %v207
      %v229 = vunpack.c.l.b16 %v208
      %v230 = vunpack.c.l.b16 %v209
      %v231 = vpack.c.b16 %v224, %v223
      %v232 = vpack.c.b16 %v226, %v225
      %v233 = vpack.c.b16 %v228, %v227
      %v234 = vpack.c.b16 %v230, %v229
      %v240 = vunpack.c.l.b16 %v210
      %v241 = vunpack.c.l.b16 %v211
      %v242 = vunpack.c.l.b16 %v212
      %v243 = vunpack.c.l.b16 %v213
      %v244 = vunpack.c.l.b16 %v214
      %v245 = vpack.c.b16 %v241, %v240
      %v246 = vpack.c.b16 %v243, %v242
      %v247 = vpack.c.b16 %v244, %v244
      %vm250 = vcmask 293888
      %v252 = vsel %vm250, %v231, 0
      %v255 = vsel %vm250, %v232, 0
      %v258 = vsel %vm250, %v233, 0
      %v261 = vsel %vm250, %v234, 0
      %vm263 = vcmask 1041408
      %v265 = vsel %vm263, %v247, 0
      %267 = vmatpush.bf16.msra.mxu0 0
      %268 = vmatpush.bf16.msra.mxu0 0
      %269 = vmatpush.bf16.msra.mxu0 0
      %270 = vmatpush.bf16.msra.mxu0 0
      %271 = vmatpush.bf16.msra.mxu0 0
      %272 = vmatpush.bf16.msra.mxu0 %v265
      %273 = vmatpush.bf16.msra.mxu0 %v246
      %274 = vmatpush.bf16.msra.mxu0 %v245
      %275 = vmatmul.bf16.gmra.mxu0 %v252
      %v276 = vpop.f32.mrf.mxu0
      %v277 = vadd.f32 0.0, %v276
      %v278 = vpop.f32.mrf.mxu0
      %v279 = vadd.f32 0.0, %v278
      %280 = vmatmul.bf16.gmra.mxu0 %v255
      %v281 = vpop.f32.mrf.mxu0
      %v282 = vadd.f32 0.0, %v281
      %v283 = vpop.f32.mrf.mxu0
      %v284 = vadd.f32 0.0, %v283
      %285 = vmatmul.bf16.gmra.mxu0 %v258
      %v286 = vpop.f32.mrf.mxu0
      %v287 = vadd.f32 0.0, %v286
      %v288 = vpop.f32.mrf.mxu0
      %v289 = vadd.f32 0.0, %v288
      %290 = vmatmul.bf16.gmra.mxu0 %v261
      %v291 = vpop.f32.mrf.mxu0
      %v292 = vadd.f32 0.0, %v291
      %v293 = vpop.f32.mrf.mxu0
      %v294 = vadd.f32 0.0, %v293
      %295 = vdwg.mxu0
      %v296 = vld [vmem:[%s2] sm:$0x1]
      %v298 = vperm.slane %v296, 0
      %v300 = vmul.f32 %v277, %v298
      %v301 = vmul.f32 %v279, %v298
      %v302 = vmul.f32 %v282, %v298
      %v303 = vmul.f32 %v284, %v298
      %v304 = vmul.f32 %v287, %v298
      %v305 = vmul.f32 %v289, %v298
      %v306 = vmul.f32 %v292, %v298
      %v307 = vmul.f32 %v294, %v298
      %v308 = vld [vmem:[%s3] sm:$0x1]
      %v310 = vperm.slane %v308, 0
      %v312 = vadd.f32 %v300, %v310
      %v313 = vadd.f32 %v301, %v310
      %v314 = vadd.f32 %v302, %v310
      %v315 = vadd.f32 %v303, %v310
      %v316 = vadd.f32 %v304, %v310
      %v317 = vadd.f32 %v305, %v310
      %v318 = vadd.f32 %v306, %v310
      %v319 = vadd.f32 %v307, %v310
      %v320 = vmul.f32 %v312, 0.01
      %v321 = vmul.f32 %v313, 0.01
      %v322 = vmul.f32 %v314, 0.01
      %v323 = vmul.f32 %v315, 0.01
      %v324 = vmul.f32 %v316, 0.01
      %v325 = vmul.f32 %v317, 0.01
      %v326 = vmul.f32 %v318, 0.01
      %v327 = vmul.f32 %v319, 0.01
      %v328 = vmax.f32 %v312, %v320
      %v329 = vmax.f32 %v313, %v321
      %v330 = vmax.f32 %v314, %v322
      %v331 = vmax.f32 %v315, %v323
      %v332 = vmax.f32 %v316, %v324
      %v333 = vmax.f32 %v317, %v325
      %v334 = vmax.f32 %v318, %v326
      %v335 = vmax.f32 %v319, %v327
      %336 = vst [vmem:[%s199] sm:$0xff] %v328
      %337 = vst [vmem:[%s199 + $0x8] sm:$0xff] %v329
      %338 = vst [vmem:[%s199 + $0x10] sm:$0xff] %v330
      %339 = vst [vmem:[%s199 + $0x18] sm:$0xff] %v331
      %340 = vst [vmem:[%s199 + $0x20] sm:$0xff] %v332
      %341 = vst [vmem:[%s199 + $0x28] sm:$0xff] %v333
      %342 = vst [vmem:[%s199 + $0x30] sm:$0xff] %v334
      %343 = vst [vmem:[%s199 + $0x38] sm:$0xff] %v335
      %s344 = smul.u32 8, %s15
      %p345 = scmp.lt.s32.totalorder %s344, 15
      %s346 = scalar_select %p345, %s344, 15
      %s347 = smul.addr %s346, 8
      %s348 = scalar_lea.vmem %s4, %s347
      // Predicated region
      $region37: #{down_conv.3} parent=35 // pred_check
        %p349 = pneg %p122
      $region38: #{down_conv.3} parent=35 // pred_check_branch
        %351 = sbr.rel (%p349) target = $region40
      $region39: #{down_conv.3} parent=35 // pred_region
        %s352 = smul.u32 8, %s15
      $region40: #{down_conv.3} parent=35 // pred_fallthru
        _
    $region36: #{down_conv.3} parent=5 // pred_fallthru
      _
    %p353 = scmp.le.s32.totalorder 2, %s10
    // Predicated region
    $region41: #{down_conv.3} parent=5 // pred_check
      %p354 = pneg %p353
    $region42: #{down_conv.3} parent=5 // pred_check_branch
      %356 = sbr.rel (%p354) target = $region44
    $region43: #{down_conv.3} parent=5 // pred_region
      %s357 = ssub.s32 %s10, 2
      // Predicated region
      $region45: #{down_conv.3} parent=43 // pred_check
        %p358 = pneg %p128
      $region46: #{down_conv.3} parent=43 // pred_check_branch
        %360 = sbr.rel (%p358) target = $region48
      $region47: #{down_conv.3} parent=43 // pred_region
        %s361 = smul.u32 8, %s16
        %p362 = scmp.lt.s32.totalorder %s361, 15
        %s363 = scalar_select %p362, %s361, 15
        %s364 = smul.addr %s363, 8
        %s365 = scalar_lea.vmem %s4, %s364
      $region48: #{down_conv.3} parent=43 // pred_fallthru
        _
    $region44: #{down_conv.3} parent=5 // pred_fallthru
      _
  $region6: #{down_conv.3} parent=0 // loop_footer
    %s14 = sadd.s32 1, %s10
  $region7: #{down_conv.3} parent=0 // loop_footer_branch
    %9 = sbr.rel target = $region3
  $region8: #{down_conv.3} parent=0 // loop_exit
    _

</llo_original>
